<compile_context>
chip_gen: v5e
topology: v5e:2x2
jax: 0.10.0
libtpu: 0.0.40
codegen_flags: <defaults>
</compile_context>

<pallas_src>
import functools

import jax
import jax.numpy as jnp
from jax import lax
from jax.experimental import pallas as pl
from jax.experimental.pallas import tpu as pltpu


_TM_V7X = 512          # 64 MiB VMEM generations (v7x) / unknown
_TM_BIG_VMEM = 1024    # 128 MiB VMEM generations (v5e / v6e)
_VMEM_LIMIT = 48 * 1024 * 1024   # scoped-VMEM request (< v7x 64 MiB physical)


@functools.lru_cache(maxsize=None)
def _default_tm():
    """Row tile for the 1x1 kernels; bigger on chips with 128 MiB VMEM."""
    try:
        info = pltpu.get_tpu_info()
        vmem = getattr(info, "vmem_capacity_bytes", None)
        if vmem is not None and vmem >= 100 * 1024 * 1024:
            return _TM_BIG_VMEM
    except Exception:
        pass
    return _TM_V7X


def _cost(flops, bytes_accessed):
    return pl.CostEstimate(flops=int(flops), transcendentals=0,
                           bytes_accessed=int(bytes_accessed))


# ------------------------------- Pallas kernels ----------------------------- #

def _pw_bias_kernel(x_ref, w_ref, b_ref, o_ref, *, relu):
    # x_ref: (TM, Cin), w_ref: (Cin, Cout) BN-folded, b_ref: (1, Cout) f32.
    y = jnp.dot(x_ref[...], w_ref[...], preferred_element_type=jnp.float32)
    y = y + b_ref[...]
    if relu:
        y = jnp.maximum(y, 0.0)
    o_ref[...] = y.astype(o_ref.dtype)


def _conv1_downsample_kernel(x_ref, w1_ref, b1_ref, wd_ref, bd_ref, o1_ref, od_ref):
    # conv1(1x1)+bn1+ReLU and downsample 1x1+bn share ONE read of the input tile.
    x = x_ref[...]
    y1 = jnp.dot(x, w1_ref[...], preferred_element_type=jnp.float32) + b1_ref[...]
    o1_ref[...] = jnp.maximum(y1, 0.0).astype(o1_ref.dtype)
    yd = jnp.dot(x, wd_ref[...], preferred_element_type=jnp.float32) + bd_ref[...]
    od_ref[...] = yd.astype(od_ref.dtype)


def _pw_bias_add_relu_kernel(x_ref, w_ref, b_ref, id_ref, o_ref):
    # conv3 (1x1) + bn3 + residual add + ReLU, fused.
    y = jnp.dot(x_ref[...], w_ref[...], preferred_element_type=jnp.float32)
    y = y + b_ref[...] + id_ref[...].astype(jnp.float32)
    o_ref[...] = jnp.maximum(y, 0.0).astype(o_ref.dtype)


def _conv3x3_dilated_kernel(x_ref, w_ref, b_ref, o_ref, xk_ref, *, H, W, d):
    # x_ref : (1, H, W, Cin)       one batch element (compute dtype), resident over j
    # w_ref : (3, 3*Cin, TCout)    BN-folded weights, ky-major / (kx, Cin)-packed K
    # b_ref : (1, TCout)           f32 folded-BN bias
    # o_ref : (1, H, W, TCout)
    # xk_ref: VMEM scratch (H+2d, W, 3*Cin) in COMPUTE dtype; K-packed taps:
    #         xk[r, c, kx*Cin:(kx+1)*Cin] = zero_padded_x[r, c + kx*d, :]
    cin = x_ref.shape[-1]
    tcout = o_ref.shape[-1]
    k = 3 * cin
    j = pl.program_id(1)

    @pl.when(j == 0)
    def _build_packed():
        # Depends only on the batch element -> build once per n (j is inner axis).
        # Only the zero halo is memset; interior is copied via ref slices.
        zrows = jnp.zeros((d, W, k), xk_ref.dtype)
        zcols = jnp.zeros((H, d, cin), xk_ref.dtype)
        xk_ref[pl.ds(0, d), :, :] = zrows                      # top halo rows
        xk_ref[pl.ds(H + d, d), :, :] = zrows                  # bottom halo rows
        # kx = 0: input cols [0, W-d) land at packed cols [d, W)
        xk_ref[pl.ds(d, H), pl.ds(0, d), pl.ds(0, cin)] = zcols
        xk_ref[pl.ds(d, H), pl.ds(d, W - d), pl.ds(0, cin)] = \
            x_ref[0, :, pl.ds(0, W - d), :]
        # kx = 1: aligned copy
        xk_ref[pl.ds(d, H), :, pl.ds(cin, cin)] = x_ref[0]
        # kx = 2: input cols [d, W) land at packed cols [0, W-d)
        xk_ref[pl.ds(d, H), pl.ds(0, W - d), pl.ds(2 * cin, cin)] = \
            x_ref[0, :, pl.ds(d, W - d), :]
        xk_ref[pl.ds(d, H), pl.ds(W - d, d), pl.ds(2 * cin, cin)] = zcols

    # 3 row-shifted, K-packed matmuls (K = 3*Cin) accumulated in f32 values —
    # no per-tap VMEM accumulator round trips, MXU runs in the compute dtype.
    t0 = xk_ref[pl.ds(0, H), :, :].reshape(H * W, k)
    acc = jnp.dot(t0, w_ref[0], preferred_element_type=jnp.float32)
    t1 = xk_ref[pl.ds(d, H), :, :].reshape(H * W, k)
    acc = acc + jnp.dot(t1, w_ref[1], preferred_element_type=jnp.float32)
    t2 = xk_ref[pl.ds(2 * d, H), :, :].reshape(H * W, k)
    acc = acc + jnp.dot(t2, w_ref[2], preferred_element_type=jnp.float32)

    y = jnp.maximum(acc + b_ref[...], 0.0)
    o_ref[0] = y.reshape(H, W, tcout).astype(o_ref.dtype)


# --------------------------------- wrappers --------------------------------- #

def _pointwise(x2d, w, bias, *, relu, TM):
    M, cin = x2d.shape
    cout = w.shape[1]
    nbytes = x2d.dtype.itemsize
    kern = functools.partial(_pw_bias_kernel, relu=relu)
    return pl.pallas_call(
        kern,
        out_shape=jax.ShapeDtypeStruct((M, cout), x2d.dtype),
        grid=(pl.cdiv(M, TM),),
        in_specs=[pl.BlockSpec((TM, cin), lambda i: (i, 0)),
                  pl.BlockSpec((cin, cout), lambda i: (0, 0)),
                  pl.BlockSpec((1, cout), lambda i: (0, 0))],
        out_specs=pl.BlockSpec((TM, cout), lambda i: (i, 0)),
        compiler_params=pltpu.CompilerParams(
            dimension_semantics=("parallel",),
            vmem_limit_bytes=_VMEM_LIMIT),
        cost_estimate=_cost(2 * M * cin * cout,
                            (M * cin + cin * cout + M * cout) * nbytes),
    )(x2d, w, bias)


def _conv1_and_downsample(x2d, w1, b1, wd, bd, *, TM):
    M, cin = x2d.shape
    p = w1.shape[1]
    pe = wd.shape[1]
    nbytes = x2d.dtype.itemsize
    return pl.pallas_call(
        _conv1_downsample_kernel,
        out_shape=(jax.ShapeDtypeStruct((M, p), x2d.dtype),
                   jax.ShapeDtypeStruct((M, pe), x2d.dtype)),
        grid=(pl.cdiv(M, TM),),
        in_specs=[pl.BlockSpec((TM, cin), lambda i: (i, 0)),
                  pl.BlockSpec((cin, p), lambda i: (0, 0)),
                  pl.BlockSpec((1, p), lambda i: (0, 0)),
                  pl.BlockSpec((cin, pe), lambda i: (0, 0)),
                  pl.BlockSpec((1, pe), lambda i: (0, 0))],
        out_specs=(pl.BlockSpec((TM, p), lambda i: (i, 0)),
                   pl.BlockSpec((TM, pe), lambda i: (i, 0))),
        compiler_params=pltpu.CompilerParams(
            dimension_semantics=("parallel",),
            vmem_limit_bytes=_VMEM_LIMIT),
        cost_estimate=_cost(2 * M * cin * (p + pe),
                            (M * cin + cin * (p + pe) + M * (p + pe)) * nbytes),
    )(x2d, w1, b1, wd, bd)


def _pointwise_add_relu(x2d, w, bias, identity2d, *, TM):
    M, cin = x2d.shape
    cout = w.shape[1]
    nbytes = x2d.dtype.itemsize
    return pl.pallas_call(
        _pw_bias_add_relu_kernel,
        out_shape=jax.ShapeDtypeStruct((M, cout), x2d.dtype),
        grid=(pl.cdiv(M, TM),),
        in_specs=[pl.BlockSpec((TM, cin), lambda i: (i, 0)),
                  pl.BlockSpec((cin, cout), lambda i: (0, 0)),
                  pl.BlockSpec((1, cout), lambda i: (0, 0)),
                  pl.BlockSpec((TM, cout), lambda i: (i, 0))],
        out_specs=pl.BlockSpec((TM, cout), lambda i: (i, 0)),
        compiler_params=pltpu.CompilerParams(
            dimension_semantics=("parallel",),
            vmem_limit_bytes=_VMEM_LIMIT),
        cost_estimate=_cost(2 * M * cin * cout,
                            (M * (cin + 2 * cout) + cin * cout) * nbytes),
    )(x2d, w, bias, identity2d)


def _conv2_bn_relu(x_nhwc, w2p, bias, d):
    # x_nhwc: (N, H, W, Cin) compute dtype; w2p: (3, 3*Cin, Cout) BN-folded.
    N, H, W, cin = x_nhwc.shape
    cout = w2p.shape[-1]
    # Cout tile axis bounds per-step output/weight VMEM (v7x) and adds grid points.
    tcout = 256 if (cout > 256 and cout % 256 == 0) else cout
    J = cout // tcout
    nbytes = x_nhwc.dtype.itemsize
    kern = functools.partial(_conv3x3_dilated_kernel, H=H, W=W, d=d)
    return pl.pallas_call(
        kern,
        out_shape=jax.ShapeDtypeStruct((N, H, W, cout), x_nhwc.dtype),
        grid=(N, J),
        in_specs=[pl.BlockSpec((1, H, W, cin), lambda n, j: (n, 0, 0, 0)),
                  pl.BlockSpec((3, 3 * cin, tcout), lambda n, j: (0, 0, j)),
                  pl.BlockSpec((1, tcout), lambda n, j: (0, j))],
        out_specs=pl.BlockSpec((1, H, W, tcout), lambda n, j: (n, 0, 0, j)),
        scratch_shapes=[pltpu.VMEM((H + 2 * d, W, 3 * cin), x_nhwc.dtype)],
        compiler_params=pltpu.CompilerParams(
            dimension_semantics=("parallel", "arbitrary"),
            vmem_limit_bytes=_VMEM_LIMIT),
        cost_estimate=_cost(2 * N * H * W * 9 * cin * cout,
                            (N * H * W * (cin + cout) + 9 * cin * cout) * nbytes),
    )(x_nhwc, w2p, bias)


# ------------------------------ param preparation --------------------------- #

def prepare_params(params, compute_dtype):
    """Fold BN scale into conv weights (biases stay f32); cast weights to compute dtype.

    In a stacked network this should run once at model build time, not per call.
    """
    dt = jnp.dtype(compute_dtype)
    prep = {}
    prep["w1"] = (params["w1"] * params["s1"][0]).astype(dt)
    prep["b1"] = params["b1"]
    w2s = params["w2"] * params["s2"][0]                      # (3,3,cin,cout)
    cin2, cout2 = w2s.shape[2], w2s.shape[3]
    prep["w2p"] = w2s.reshape(3, 3 * cin2, cout2).astype(dt)  # ky-major, (kx,cin) K
    prep["b2"] = params["b2"]
    prep["w3"] = (params["w3"] * params["s3"][0]).astype(dt)
    prep["b3"] = params["b3"]
    if params.get("wd") is not None:
        prep["wd"] = (params["wd"] * params["sd"][0]).astype(dt)
        prep["bd"] = params["bd"]
    else:
        prep["wd"] = None
    return prep


# --------------------------------- forward ---------------------------------- #

def bottleneck_dilated_forward(x_nchw, params, *, dilate, compute_dtype=None, tm=None):
    """Forward pass of BottleneckDilated (stride=1 variant), NCHW in / NCHW out."""
    dtype = jnp.dtype(compute_dtype) if compute_dtype is not None else x_nchw.dtype
    prep = prepare_params(params, dtype)

    x = jnp.transpose(x_nchw, (0, 2, 3, 1)).astype(dtype)     # NCHW -> NHWC
    N, H, W, cin = x.shape
    planes = prep["w1"].shape[1]
    M = N * H * W

    if tm is None:
        tm = _default_tm()
    TM = min(M, tm)          # ragged last block handled by pl.cdiv grid (masked)

    x2d = x.reshape(M, cin)

    # conv1 (1x1)+bn1+relu, fused with downsample 1x1+bn when present
    # (downsample's AvgPool2d(1) is identity for stride=1).
    if prep["wd"] is not None:
        out1_2d, ident_2d = _conv1_and_downsample(
            x2d, prep["w1"], prep["b1"], prep["wd"], prep["bd"], TM=TM)
    else:
        out1_2d = _pointwise(x2d, prep["w1"], prep["b1"], relu=True, TM=TM)
        ident_2d = x2d

    out1 = out1_2d.reshape(N, H, W, planes)

    # conv2 (3x3, dilation=d, padding=d, stride=1) + bn2 + relu
    # (zero padding + K-packing done inside the kernel in VMEM).
    out2 = _conv2_bn_relu(out1, prep["w2p"], prep["b2"], dilate)
    out2_2d = out2.reshape(M, planes)

    # conv3 (1x1) + bn3 + residual add + relu (fused).
    out_2d = _pointwise_add_relu(out2_2d, prep["w3"], prep["b3"], ident_2d, TM=TM)
    out = out_2d.reshape(N, H, W, 4 * planes)
    return jnp.transpose(out, (0, 3, 1, 2))                   # NHWC -> NCHW


# ---------------------------- parameters / reference ------------------------ #

def _fold_bn(gamma, beta, mean, var, eps=1e-5):
    scale = gamma / jnp.sqrt(var + eps)
    bias = beta - mean * scale
    return (scale.reshape(1, -1).astype(jnp.float32),
            bias.reshape(1, -1).astype(jnp.float32))


def init_params(key, inplanes, planes):
    exp = 4
    ks = jax.random.split(key, 24)

    def conv_w(k, cin, cout, fan_in):
        return jax.random.normal(k, (cin, cout), jnp.float32) / jnp.sqrt(fan_in)

    def bn(k0, k1, k2, k3, c):
        gamma = 1.0 + 0.1 * jax.random.normal(k0, (c,), jnp.float32)
        beta = 0.1 * jax.random.normal(k1, (c,), jnp.float32)
        mean = 0.1 * jax.random.normal(k2, (c,), jnp.float32)
        var = jax.random.uniform(k3, (c,), jnp.float32, minval=0.5, maxval=1.5)
        return _fold_bn(gamma, beta, mean, var)

    params = {}
    params["w1"] = conv_w(ks[0], inplanes, planes, inplanes)
    params["s1"], params["b1"] = bn(ks[1], ks[2], ks[3], ks[4], planes)
    params["w2"] = (jax.random.normal(ks[5], (3, 3, planes, planes), jnp.float32)
                    / jnp.sqrt(9.0 * planes))
    params["s2"], params["b2"] = bn(ks[6], ks[7], ks[8], ks[9], planes)
    params["w3"] = conv_w(ks[10], planes, planes * exp, planes)
    params["s3"], params["b3"] = bn(ks[11], ks[12], ks[13], ks[14], planes * exp)
    if inplanes != planes * exp:
        params["wd"] = conv_w(ks[15], inplanes, planes * exp, inplanes)
        params["sd"], params["bd"] = bn(ks[16], ks[17], ks[18], ks[19], planes * exp)
    else:
        params["wd"] = None
    return params


def reference_forward(x_nchw, params, dilate):
    """Pure-JAX (XLA) reference for correctness checking."""
    x = jnp.transpose(x_nchw, (0, 2, 3, 1))
    out1 = jax.nn.relu(jnp.einsum("nhwc,cd->nhwd", x, params["w1"])
                       * params["s1"][0] + params["b1"][0])
    out2 = lax.conv_general_dilated(
        out1, params["w2"], window_strides=(1, 1),
        padding=[(dilate, dilate), (dilate, dilate)],
        rhs_dilation=(dilate, dilate),
        dimension_numbers=("NHWC", "HWIO", "NHWC"))
    out2 = jax.nn.relu(out2 * params["s2"][0] + params["b2"][0])
    out3 = (jnp.einsum("nhwc,cd->nhwd", out2, params["w3"])
            * params["s3"][0] + params["b3"][0])
    if params.get("wd") is not None:
        ident = (jnp.einsum("nhwc,cd->nhwd", x, params["wd"])
                 * params["sd"][0] + params["bd"][0])
    else:
        ident = x
    out = jax.nn.relu(out3 + ident)
    return jnp.transpose(out, (0, 3, 1, 2))


# ------------------------------------ main ----------------------------------- #

if __name__ == "__main__":
    key = jax.random.PRNGKey(0)
    k_x, k_p, k_p2 = jax.random.split(key, 3)

    # Small shapes consistent with the module: inplanes != planes*4 -> downsample.
    N, inplanes, planes, H, W = 2, 8, 4, 16, 16
    dilate = 2   # dilated, stride=1 block

    x = jax.random.normal(k_x, (N, inplanes, H, W), jnp.float32)   # NCHW like PyTorch
    params = init_params(k_p, inplanes, planes)

    # f32 path (tight check).
    out = bottleneck_dilated_forward(x, params, dilate=dilate)
    out = jax.block_until_ready(out)
    assert out.shape == (N, planes * 4, H, W), out.shape
    ref = reference_forward(x, params, dilate)
    err = float(jnp.max(jnp.abs(out - ref)))
    assert jnp.allclose(out, ref, atol=2e-2, rtol=2e-2), f"f32 max abs err {err}"

    # bf16 activations/weights (f32 accumulation, f32 biases); loose check.
    out_bf = bottleneck_dilated_forward(x, params, dilate=dilate,
                                        compute_dtype=jnp.bfloat16)
    out_bf = jax.block_until_ready(out_bf).astype(jnp.float32)
    err_bf = float(jnp.max(jnp.abs(out_bf - ref)))
    assert jnp.allclose(out_bf, ref, atol=1.5e-1, rtol=1.5e-1), \
        f"bf16 max abs err {err_bf}"

    # Identity-shortcut path (inplanes == planes*expansion -> no downsample).
    inplanes2 = planes * 4
    x2 = jax.random.normal(k_x, (N, inplanes2, H, W), jnp.float32)
    params2 = init_params(k_p2, inplanes2, planes)
    out2 = jax.block_until_ready(bottleneck_dilated_forward(x2, params2, dilate=1))
    ref2 = reference_forward(x2, params2, 1)
    err2 = float(jnp.max(jnp.abs(out2 - ref2)))
    assert jnp.allclose(out2, ref2, atol=2e-2, rtol=2e-2), \
        f"identity-path max abs err {err2}"

    print("KERNEL_OK")
</pallas_src>

<mosaic_0001>
module attributes {stable_mosaic.version = 11 : i64} {
  func.func @_conv1_downsample_kernel(%arg0: i32, %arg1: memref<512x8xf32, #tpu.memory_space<vmem>>, %arg2: memref<8x4xf32, #tpu.memory_space<vmem>>, %arg3: memref<1x4xf32, #tpu.memory_space<vmem>>, %arg4: memref<8x16xf32, #tpu.memory_space<vmem>>, %arg5: memref<1x16xf32, #tpu.memory_space<vmem>>, %arg6: memref<512x4xf32, #tpu.memory_space<vmem>>, %arg7: memref<512x16xf32, #tpu.memory_space<vmem>>) attributes {dimension_semantics = [#tpu.dimension_semantics<parallel>], iteration_bounds = array<i64: 1>, scalar_prefetch = 0 : i64, scratch_operands = 0 : i64, tpu.core_type = #tpu.core_type<tc>, window_params = [{transform_indices = @transform_0, window_bounds = array<i64: 512, 8>}, {pipeline_mode = #tpu.pipeline_mode<synchronous>, transform_indices = @transform_1, window_bounds = array<i64: 8, 4>}, {pipeline_mode = #tpu.pipeline_mode<synchronous>, transform_indices = @transform_2, window_bounds = array<i64: 1, 4>}, {pipeline_mode = #tpu.pipeline_mode<synchronous>, transform_indices = @transform_3, window_bounds = array<i64: 8, 16>}, {pipeline_mode = #tpu.pipeline_mode<synchronous>, transform_indices = @transform_4, window_bounds = array<i64: 1, 16>}, {transform_indices = @transform_5, window_bounds = array<i64: 512, 4>}, {transform_indices = @transform_6, window_bounds = array<i64: 512, 16>}]} {
    %c0 = arith.constant 0 : index
    %c0_0 = arith.constant 0 : index
    %0 = vector.load %arg1[%c0, %c0_0] : memref<512x8xf32, #tpu.memory_space<vmem>>, vector<512x8xf32>
    %c0_1 = arith.constant 0 : index
    %c0_2 = arith.constant 0 : index
    %1 = vector.load %arg2[%c0_1, %c0_2] : memref<8x4xf32, #tpu.memory_space<vmem>>, vector<8x4xf32>
    %cst = arith.constant dense<0.000000e+00> : vector<512x4xf32>
    %2 = tpu.matmul %0, %1, %cst {dimension_numbers = #tpu.dot_dimension_numbers<[1], [0], [0], [1], [0, 0, 1, 1], [], []>} : vector<512x8xf32>, vector<8x4xf32>, vector<512x4xf32> -> vector<512x4xf32>
    %c0_3 = arith.constant 0 : index
    %c0_4 = arith.constant 0 : index
    %3 = vector.load %arg3[%c0_3, %c0_4] : memref<1x4xf32, #tpu.memory_space<vmem>>, vector<1x4xf32>
    %4 = vector.broadcast %3 : vector<1x4xf32> to vector<512x4xf32>
    %5 = arith.addf %2, %4 : vector<512x4xf32>
    %cst_5 = arith.constant 0.000000e+00 : f32
    %6 = vector.broadcast %cst_5 : f32 to vector<512x4xf32>
    %7 = arith.maximumf %5, %6 : vector<512x4xf32>
    %c0_6 = arith.constant 0 : index
    %c0_7 = arith.constant 0 : index
    %8 = vector.load %arg6[%c0_6, %c0_7] : memref<512x4xf32, #tpu.memory_space<vmem>>, vector<512x4xf32>
    tpu.vector_store %arg6[%c0_6, %c0_7], %7 {strides = array<i32>} : memref<512x4xf32, #tpu.memory_space<vmem>>, vector<512x4xf32>,
    %c0_8 = arith.constant 0 : index
    %c0_9 = arith.constant 0 : index
    %9 = vector.load %arg4[%c0_8, %c0_9] : memref<8x16xf32, #tpu.memory_space<vmem>>, vector<8x16xf32>
    %cst_10 = arith.constant dense<0.000000e+00> : vector<512x16xf32>
    %10 = tpu.matmul %0, %9, %cst_10 {dimension_numbers = #tpu.dot_dimension_numbers<[1], [0], [0], [1], [0, 0, 1, 1], [], []>} : vector<512x8xf32>, vector<8x16xf32>, vector<512x16xf32> -> vector<512x16xf32>
    %c0_11 = arith.constant 0 : index
    %c0_12 = arith.constant 0 : index
    %11 = vector.load %arg5[%c0_11, %c0_12] : memref<1x16xf32, #tpu.memory_space<vmem>>, vector<1x16xf32>
    %12 = vector.broadcast %11 : vector<1x16xf32> to vector<512x16xf32>
    %13 = arith.addf %10, %12 : vector<512x16xf32>
    %c0_13 = arith.constant 0 : index
    %c0_14 = arith.constant 0 : index
    %14 = vector.load %arg7[%c0_13, %c0_14] : memref<512x16xf32, #tpu.memory_space<vmem>>, vector<512x16xf32>
    tpu.vector_store %arg7[%c0_13, %c0_14], %13 {strides = array<i32>} : memref<512x16xf32, #tpu.memory_space<vmem>>, vector<512x16xf32>,
    return
  }
  func.func @transform_0(%arg0: i32) -> (i32, i32) {
    %c0_i32 = arith.constant 0 : i32
    %c0_i32_0 = arith.constant 0 : i32
    return %arg0, %c0_i32 : i32, i32
  }
  func.func @transform_1(%arg0: i32) -> (i32, i32) {
    %c0_i32 = arith.constant 0 : i32
    %c0_i32_0 = arith.constant 0 : i32
    %c0_i32_1 = arith.constant 0 : i32
    return %c0_i32, %c0_i32_0 : i32, i32
  }
  func.func @transform_2(%arg0: i32) -> (i32, i32) {
    %c0_i32 = arith.constant 0 : i32
    %c0_i32_0 = arith.constant 0 : i32
    %c0_i32_1 = arith.constant 0 : i32
    return %c0_i32, %c0_i32_0 : i32, i32
  }
  func.func @transform_3(%arg0: i32) -> (i32, i32) {
    %c0_i32 = arith.constant 0 : i32
    %c0_i32_0 = arith.constant 0 : i32
    %c0_i32_1 = arith.constant 0 : i32
    return %c0_i32, %c0_i32_0 : i32, i32
  }
  func.func @transform_4(%arg0: i32) -> (i32, i32) {
    %c0_i32 = arith.constant 0 : i32
    %c0_i32_0 = arith.constant 0 : i32
    %c0_i32_1 = arith.constant 0 : i32
    return %c0_i32, %c0_i32_0 : i32, i32
  }
  func.func @transform_5(%arg0: i32) -> (i32, i32) {
    %c0_i32 = arith.constant 0 : i32
    %c0_i32_0 = arith.constant 0 : i32
    return %arg0, %c0_i32 : i32, i32
  }
  func.func @transform_6(%arg0: i32) -> (i32, i32) {
    %c0_i32 = arith.constant 0 : i32
    %c0_i32_0 = arith.constant 0 : i32
    return %arg0, %c0_i32 : i32, i32
  }
}

</mosaic_0001>

<llo_original>
// kernel: tpu_custom_call.1
$region0: #{tpu_custom_call.1}
  #allocation0 [shape = 'u32[]', space=smem, size = 0x4, offset = 0x4, fixed_abs, tag = 'smem constant byte address 0x4 - core index']
  #allocation1 [shape = 'u32[72,128]{1,0:T(1,128)}', space=vmem, size = 0x9000, scoped, tag = 'internal scratch']
  %s0 = inlined_call_operand.vmem [shape: f32[512,8], index: 0, kind: input, shape index: {}]
  %s1 = inlined_call_operand.vmem [shape: f32[8,4], index: 1, kind: input, shape index: {}]
  %s2 = inlined_call_operand.vmem [shape: f32[1,4], index: 2, kind: input, shape index: {}]
  %s3 = inlined_call_operand.vmem [shape: f32[8,16], index: 3, kind: input, shape index: {}]
  %s4 = inlined_call_operand.vmem [shape: f32[1,16], index: 4, kind: input, shape index: {}]
  %s5 = inlined_call_operand.vmem [shape: f32[512,4], index: 5, kind: output, shape index: {0}]
  %s6 = inlined_call_operand.vmem [shape: f32[512,16], index: 6, kind: output, shape index: {1}]
  %7 = xla_tuple %s5, %s6
  %s8 = sld [smem:[#allocation0]]
  $region38: #{tpu_custom_call.1} parent=0
    _
  %s10 = ssub.s32 1, %s8
  %s11 = scalar_select 0, %s10, %s8
  // Predicated region
  $region2: #{tpu_custom_call.1} parent=0 // pred_check
    _
  $region3: #{tpu_custom_call.1} parent=0 // pred_check_branch
    %13 = sbr.rel (0) target = $region5
  $region4: #{tpu_custom_call.1} parent=0 // pred_region
    _
  $region5: #{tpu_custom_call.1} parent=0 // pred_fallthru
    _
  // Predicated region
  $region6: #{tpu_custom_call.1} parent=0 // pred_check
    _
  $region7: #{tpu_custom_call.1} parent=0 // pred_check_branch
    %15 = sbr.rel (0) target = $region9
  $region8: #{tpu_custom_call.1} parent=0 // pred_region
    _
  $region9: #{tpu_custom_call.1} parent=0 // pred_fallthru
    _
  // Predicated region
  $region10: #{tpu_custom_call.1} parent=0 // pred_check
    _
  $region11: #{tpu_custom_call.1} parent=0 // pred_check_branch
    %17 = sbr.rel (0) target = $region13
  $region12: #{tpu_custom_call.1} parent=0 // pred_region
    _
  $region13: #{tpu_custom_call.1} parent=0 // pred_fallthru
    _
  // Predicated region
  $region14: #{tpu_custom_call.1} parent=0 // pred_check
    _
  $region15: #{tpu_custom_call.1} parent=0 // pred_check_branch
    %19 = sbr.rel (0) target = $region17
  $region16: #{tpu_custom_call.1} parent=0 // pred_region
    _
  $region17: #{tpu_custom_call.1} parent=0 // pred_fallthru
    _
  // Predicated region
  $region18: #{tpu_custom_call.1} parent=0 // pred_check
    _
  $region19: #{tpu_custom_call.1} parent=0 // pred_check_branch
    %21 = sbr.rel (0) target = $region21
  $region20: #{tpu_custom_call.1} parent=0 // pred_region
    _
  $region21: #{tpu_custom_call.1} parent=0 // pred_fallthru
    _
  %v22 = vld [vmem:[%s0] sm:$0xff]
  %v23 = vld [vmem:[%s0 + $0x8] sm:$0xff]
  %v24 = vld [vmem:[%s0 + $0x10] sm:$0xff]
  %v25 = vld [vmem:[%s0 + $0x18] sm:$0xff]
  %v26 = vld [vmem:[%s0 + $0x20] sm:$0xff]
  %v27 = vld [vmem:[%s0 + $0x28] sm:$0xff]
  %v28 = vld [vmem:[%s0 + $0x30] sm:$0xff]
  %v29 = vld [vmem:[%s0 + $0x38] sm:$0xff]
  %v30 = vld [vmem:[%s0 + $0x40] sm:$0xff]
  %v31 = vld [vmem:[%s0 + $0x48] sm:$0xff]
  %v32 = vld [vmem:[%s0 + $0x50] sm:$0xff]
  %v33 = vld [vmem:[%s0 + $0x58] sm:$0xff]
  %v34 = vld [vmem:[%s0 + $0x60] sm:$0xff]
  %v35 = vld [vmem:[%s0 + $0x68] sm:$0xff]
  %v36 = vld [vmem:[%s0 + $0x70] sm:$0xff]
  %v37 = vld [vmem:[%s0 + $0x78] sm:$0xff]
  %v38 = vld [vmem:[%s0 + $0x80] sm:$0xff]
  %v39 = vld [vmem:[%s0 + $0x88] sm:$0xff]
  %v40 = vld [vmem:[%s0 + $0x90] sm:$0xff]
  %v41 = vld [vmem:[%s0 + $0x98] sm:$0xff]
  %v42 = vld [vmem:[%s0 + $0xa0] sm:$0xff]
  %v43 = vld [vmem:[%s0 + $0xa8] sm:$0xff]
  %v44 = vld [vmem:[%s0 + $0xb0] sm:$0xff]
  %v45 = vld [vmem:[%s0 + $0xb8] sm:$0xff]
  %v46 = vld [vmem:[%s0 + $0xc0] sm:$0xff]
  %v47 = vld [vmem:[%s0 + $0xc8] sm:$0xff]
  %v48 = vld [vmem:[%s0 + $0xd0] sm:$0xff]
  %v49 = vld [vmem:[%s0 + $0xd8] sm:$0xff]
  %v50 = vld [vmem:[%s0 + $0xe0] sm:$0xff]
  %v51 = vld [vmem:[%s0 + $0xe8] sm:$0xff]
  %v52 = vld [vmem:[%s0 + $0xf0] sm:$0xff]
  %v53 = vld [vmem:[%s0 + $0xf8] sm:$0xff]
  %v54 = vld [vmem:[%s0 + $0x100] sm:$0xff]
  %v55 = vld [vmem:[%s0 + $0x108] sm:$0xff]
  %v56 = vld [vmem:[%s0 + $0x110] sm:$0xff]
  %v57 = vld [vmem:[%s0 + $0x118] sm:$0xff]
  %v58 = vld [vmem:[%s0 + $0x120] sm:$0xff]
  %v59 = vld [vmem:[%s0 + $0x128] sm:$0xff]
  %v60 = vld [vmem:[%s0 + $0x130] sm:$0xff]
  %v61 = vld [vmem:[%s0 + $0x138] sm:$0xff]
  %v62 = vld [vmem:[%s0 + $0x140] sm:$0xff]
  %v63 = vld [vmem:[%s0 + $0x148] sm:$0xff]
  %v64 = vld [vmem:[%s0 + $0x150] sm:$0xff]
  %v65 = vld [vmem:[%s0 + $0x158] sm:$0xff]
  %v66 = vld [vmem:[%s0 + $0x160] sm:$0xff]
  %v67 = vld [vmem:[%s0 + $0x168] sm:$0xff]
  %v68 = vld [vmem:[%s0 + $0x170] sm:$0xff]
  %v69 = vld [vmem:[%s0 + $0x178] sm:$0xff]
  %v70 = vld [vmem:[%s0 + $0x180] sm:$0xff]
  %v71 = vld [vmem:[%s0 + $0x188] sm:$0xff]
  %v72 = vld [vmem:[%s0 + $0x190] sm:$0xff]
  %v73 = vld [vmem:[%s0 + $0x198] sm:$0xff]
  %v74 = vld [vmem:[%s0 + $0x1a0] sm:$0xff]
  %v75 = vld [vmem:[%s0 + $0x1a8] sm:$0xff]
  %v76 = vld [vmem:[%s0 + $0x1b0] sm:$0xff]
  %v77 = vld [vmem:[%s0 + $0x1b8] sm:$0xff]
  %v78 = vld [vmem:[%s0 + $0x1c0] sm:$0xff]
  %v79 = vld [vmem:[%s0 + $0x1c8] sm:$0xff]
  %v80 = vld [vmem:[%s0 + $0x1d0] sm:$0xff]
  %v81 = vld [vmem:[%s0 + $0x1d8] sm:$0xff]
  %v82 = vld [vmem:[%s0 + $0x1e0] sm:$0xff]
  %v83 = vld [vmem:[%s0 + $0x1e8] sm:$0xff]
  %v84 = vld [vmem:[%s0 + $0x1f0] sm:$0xff]
  %v85 = vld [vmem:[%s0 + $0x1f8] sm:$0xff]
  %v86 = vld [vmem:[%s1] sm:$0xff]
  %v87 = vld [vmem:[%s2] sm:$0x1]
  %v89 = vperm.slane %v87, 0
  %vm91 = vcmask 64512
  %v93 = vsel %vm91, %v22, 0
  %v96 = vsel %vm91, %v23, 0
  %v99 = vsel %vm91, %v24, 0
  %v102 = vsel %vm91, %v25, 0
  %v105 = vsel %vm91, %v26, 0
  %v108 = vsel %vm91, %v27, 0
  %v111 = vsel %vm91, %v28, 0
  %v114 = vsel %vm91, %v29, 0
  %v117 = vsel %vm91, %v30, 0
  %v120 = vsel %vm91, %v31, 0
  %v123 = vsel %vm91, %v32, 0
  %v126 = vsel %vm91, %v33, 0
  %v129 = vsel %vm91, %v34, 0
  %v132 = vsel %vm91, %v35, 0
  %v135 = vsel %vm91, %v36, 0
  %v138 = vsel %vm91, %v37, 0
  %v141 = vsel %vm91, %v38, 0
  %v144 = vsel %vm91, %v39, 0
  %v147 = vsel %vm91, %v40, 0
  %v150 = vsel %vm91, %v41, 0
  %v153 = vsel %vm91, %v42, 0
  %v156 = vsel %vm91, %v43, 0
  %v159 = vsel %vm91, %v44, 0
  %v162 = vsel %vm91, %v45, 0
  %v165 = vsel %vm91, %v46, 0
  %v168 = vsel %vm91, %v47, 0
  %v171 = vsel %vm91, %v48, 0
  %v174 = vsel %vm91, %v49, 0
  %v177 = vsel %vm91, %v50, 0
  %v180 = vsel %vm91, %v51, 0
  %v183 = vsel %vm91, %v52, 0
  %v186 = vsel %vm91, %v53, 0
  %v189 = vsel %vm91, %v54, 0
  %v192 = vsel %vm91, %v55, 0
  %v195 = vsel %vm91, %v56, 0
  %v198 = vsel %vm91, %v57, 0
  %v201 = vsel %vm91, %v58, 0
  %v204 = vsel %vm91, %v59, 0
  %v207 = vsel %vm91, %v60, 0
  %v210 = vsel %vm91, %v61, 0
  %v213 = vsel %vm91, %v62, 0
  %v216 = vsel %vm91, %v63, 0
  %v219 = vsel %vm91, %v64, 0
  %v222 = vsel %vm91, %v65, 0
  %v225 = vsel %vm91, %v66, 0
  %v228 = vsel %vm91, %v67, 0
  %v231 = vsel %vm91, %v68, 0
  %v234 = vsel %vm91, %v69, 0
  %v237 = vsel %vm91, %v70, 0
  %v240 = vsel %vm91, %v71, 0
  %v243 = vsel %vm91, %v72, 0
  %v246 = vsel %vm91, %v73, 0
  %v249 = vsel %vm91, %v74, 0
  %v252 = vsel %vm91, %v75, 0
  %v255 = vsel %vm91, %v76, 0
  %v258 = vsel %vm91, %v77, 0
  %v261 = vsel %vm91, %v78, 0
  %v264 = vsel %vm91, %v79, 0
  %v267 = vsel %vm91, %v80, 0
  %v270 = vsel %vm91, %v81, 0
  %v273 = vsel %vm91, %v82, 0
  %v276 = vsel %vm91, %v83, 0
  %v279 = vsel %vm91, %v84, 0
  %v282 = vsel %vm91, %v85, 0
  %284 = vmatpush.msra.mxu0 0.0
  %285 = vmatpush.msra.mxu0 0.0
  %286 = vmatpush.msra.mxu0 0.0
  %287 = vmatpush.msra.mxu0 0.0
  %288 = vmatpush.msra.mxu0 0.0
  %289 = vmatpush.msra.mxu0 0.0
  %290 = vmatpush.msra.mxu0 0.0
  %291 = vmatpush.msra.mxu0 0.0
  %292 = vmatpush.msra.mxu0 0.0
  %293 = vmatpush.msra.mxu0 0.0
  %294 = vmatpush.msra.mxu0 0.0
  %295 = vmatpush.msra.mxu0 0.0
  %296 = vmatpush.msra.mxu0 0.0
  %297 = vmatpush.msra.mxu0 0.0
  %298 = vmatpush.msra.mxu0 0.0
  %299 = vmatpush.msra.mxu0 %v86
  %300 = vmatmul.f32.gmra.mxu0 %v93
  %v301 = vpop.f32.mrf.mxu0
  %v302 = vadd.f32 %v89, %v301
  %303 = vmatmul.f32.gmra.mxu0 %v96
  %v304 = vpop.f32.mrf.mxu0
  %v305 = vadd.f32 %v89, %v304
  %306 = vmatmul.f32.gmra.mxu0 %v99
  %v307 = vpop.f32.mrf.mxu0
  %v308 = vadd.f32 %v89, %v307
  %309 = vmatmul.f32.gmra.mxu0 %v102
  %v310 = vpop.f32.mrf.mxu0
  %v311 = vadd.f32 %v89, %v310
  %312 = vmatmul.f32.gmra.mxu0 %v105
  %v313 = vpop.f32.mrf.mxu0
  %v314 = vadd.f32 %v89, %v313
  %315 = vmatmul.f32.gmra.mxu0 %v108
  %v316 = vpop.f32.mrf.mxu0
  %v317 = vadd.f32 %v89, %v316
  %318 = vmatmul.f32.gmra.mxu0 %v111
  %v319 = vpop.f32.mrf.mxu0
  %v320 = vadd.f32 %v89, %v319
  %321 = vmatmul.f32.gmra.mxu0 %v114
  %v322 = vpop.f32.mrf.mxu0
  %v323 = vadd.f32 %v89, %v322
  %324 = vmatmul.f32.gmra.mxu0 %v117
  %v325 = vpop.f32.mrf.mxu0
  %v326 = vadd.f32 %v89, %v325
  %327 = vmatmul.f32.gmra.mxu0 %v120
  %v328 = vpop.f32.mrf.mxu0
  %v329 = vadd.f32 %v89, %v328
  %330 = vmatmul.f32.gmra.mxu0 %v123
  %v331 = vpop.f32.mrf.mxu0
  %v332 = vadd.f32 %v89, %v331
  %333 = vmatmul.f32.gmra.mxu0 %v126
  %v334 = vpop.f32.mrf.mxu0
  %v335 = vadd.f32 %v89, %v334
  %336 = vmatmul.f32.gmra.mxu0 %v129
  %v337 = vpop.f32.mrf.mxu0
  %v338 = vadd.f32 %v89, %v337
  %339 = vmatmul.f32.gmra.mxu0 %v132
  %v340 = vpop.f32.mrf.mxu0
  %v341 = vadd.f32 %v89, %v340
  %342 = vmatmul.f32.gmra.mxu0 %v135
  %v343 = vpop.f32.mrf.mxu0
  %v344 = vadd.f32 %v89, %v343
  %345 = vmatmul.f32.gmra.mxu0 %v138
  %v346 = vpop.f32.mrf.mxu0
  %v347 = vadd.f32 %v89, %v346
  %348 = vmatmul.f32.gmra.mxu0 %v141
  %v349 = vpop.f32.mrf.mxu0
  %v350 = vadd.f32 %v89, %v349
  %351 = vmatmul.f32.gmra.mxu0 %v144
  %v352 = vpop.f32.mrf.mxu0
  %v353 = vadd.f32 %v89, %v352
  %354 = vmatmul.f32.gmra.mxu0 %v147
  %v355 = vpop.f32.mrf.mxu0
  %v356 = vadd.f32 %v89, %v355
  %357 = vmatmul.f32.gmra.mxu0 %v150
  %v358 = vpop.f32.mrf.mxu0
  %v359 = vadd.f32 %v89, %v358
  %360 = vmatmul.f32.gmra.mxu0 %v153
  %v361 = vpop.f32.mrf.mxu0
  %v362 = vadd.f32 %v89, %v361
  %363 = vmatmul.f32.gmra.mxu0 %v156
  %v364 = vpop.f32.mrf.mxu0
  %v365 = vadd.f32 %v89, %v364
  %366 = vmatmul.f32.gmra.mxu0 %v159
  %v367 = vpop.f32.mrf.mxu0
  %v368 = vadd.f32 %v89, %v367
  %369 = vmatmul.f32.gmra.mxu0 %v162
  %v370 = vpop.f32.mrf.mxu0
  %v371 = vadd.f32 %v89, %v370
  %372 = vmatmul.f32.gmra.mxu0 %v165
  %v373 = vpop.f32.mrf.mxu0
  %v374 = vadd.f32 %v89, %v373
  %375 = vmatmul.f32.gmra.mxu0 %v168
  %v376 = vpop.f32.mrf.mxu0
  %v377 = vadd.f32 %v89, %v376
  %378 = vmatmul.f32.gmra.mxu0 %v171
  %v379 = vpop.f32.mrf.mxu0
  %v380 = vadd.f32 %v89, %v379
  %381 = vmatmul.f32.gmra.mxu0 %v174
  %v382 = vpop.f32.mrf.mxu0
  %v383 = vadd.f32 %v89, %v382
  %384 = vmatmul.f32.gmra.mxu0 %v177
  %v385 = vpop.f32.mrf.mxu0
  %v386 = vadd.f32 %v89, %v385
  %387 = vmatmul.f32.gmra.mxu0 %v180
  %v388 = vpop.f32.mrf.mxu0
  %v389 = vadd.f32 %v89, %v388
  %390 = vmatmul.f32.gmra.mxu0 %v183
  %v391 = vpop.f32.mrf.mxu0
  %v392 = vadd.f32 %v89, %v391
  %393 = vmatmul.f32.gmra.mxu0 %v186
  %v394 = vpop.f32.mrf.mxu0
  %v395 = vadd.f32 %v89, %v394
  %396 = vmatmul.f32.gmra.mxu0 %v189
  %v397 = vpop.f32.mrf.mxu0
  %v398 = vadd.f32 %v89, %v397
  %399 = vmatmul.f32.gmra.mxu0 %v192
  %v400 = vpop.f32.mrf.mxu0
  %v401 = vadd.f32 %v89, %v400
  %402 = vmatmul.f32.gmra.mxu0 %v195
  %v403 = vpop.f32.mrf.mxu0
  %v404 = vadd.f32 %v89, %v403
  %405 = vmatmul.f32.gmra.mxu0 %v198
  %v406 = vpop.f32.mrf.mxu0
  %v407 = vadd.f32 %v89, %v406
  %408 = vmatmul.f32.gmra.mxu0 %v201
  %v409 = vpop.f32.mrf.mxu0
  %v410 = vadd.f32 %v89, %v409
  %411 = vmatmul.f32.gmra.mxu0 %v204
  %v412 = vpop.f32.mrf.mxu0
  %v413 = vadd.f32 %v89, %v412
  %414 = vmatmul.f32.gmra.mxu0 %v207
  %v415 = vpop.f32.mrf.mxu0
  %v416 = vadd.f32 %v89, %v415
  %417 = vmatmul.f32.gmra.mxu0 %v210
  %v418 = vpop.f32.mrf.mxu0
  %v419 = vadd.f32 %v89, %v418
  %420 = vmatmul.f32.gmra.mxu0 %v213
  %v421 = vpop.f32.mrf.mxu0
  %v422 = vadd.f32 %v89, %v421
  %423 = vmatmul.f32.gmra.mxu0 %v216
  %v424 = vpop.f32.mrf.mxu0
  %v425 = vadd.f32 %v89, %v424
  %426 = vmatmul.f32.gmra.mxu0 %v219
  %v427 = vpop.f32.mrf.mxu0
  %v428 = vadd.f32 %v89, %v427
  %429 = vmatmul.f32.gmra.mxu0 %v222
  %v430 = vpop.f32.mrf.mxu0
  %v431 = vadd.f32 %v89, %v430
  %432 = vmatmul.f32.gmra.mxu0 %v225
  %v433 = vpop.f32.mrf.mxu0
  %v434 = vadd.f32 %v89, %v433
  %435 = vmatmul.f32.gmra.mxu0 %v228
  %v436 = vpop.f32.mrf.mxu0
  %v437 = vadd.f32 %v89, %v436
  %438 = vmatmul.f32.gmra.mxu0 %v231
  %v439 = vpop.f32.mrf.mxu0
  %v440 = vadd.f32 %v89, %v439
  %441 = vmatmul.f32.gmra.mxu0 %v234
  %v442 = vpop.f32.mrf.mxu0
  %v443 = vadd.f32 %v89, %v442
  %444 = vmatmul.f32.gmra.mxu0 %v237
  %v445 = vpop.f32.mrf.mxu0
  %v446 = vadd.f32 %v89, %v445
  %447 = vmatmul.f32.gmra.mxu0 %v240
  %v448 = vpop.f32.mrf.mxu0
  %v449 = vadd.f32 %v89, %v448
  %450 = vmatmul.f32.gmra.mxu0 %v243
  %v451 = vpop.f32.mrf.mxu0
  %v452 = vadd.f32 %v89, %v451
  %453 = vmatmul.f32.gmra.mxu0 %v246
  %v454 = vpop.f32.mrf.mxu0
  %v455 = vadd.f32 %v89, %v454
  %456 = vmatmul.f32.gmra.mxu0 %v249
  %v457 = vpop.f32.mrf.mxu0
  %v458 = vadd.f32 %v89, %v457
  %459 = vmatmul.f32.gmra.mxu0 %v252
  %v460 = vpop.f32.mrf.mxu0
  %v461 = vadd.f32 %v89, %v460
  %462 = vmatmul.f32.gmra.mxu0 %v255
  %v463 = vpop.f32.mrf.mxu0
  %v464 = vadd.f32 %v89, %v463
  %465 = vmatmul.f32.gmra.mxu0 %v258
  %v466 = vpop.f32.mrf.mxu0
  %v467 = vadd.f32 %v89, %v466
  %468 = vmatmul.f32.gmra.mxu0 %v261
  %v469 = vpop.f32.mrf.mxu0
  %v470 = vadd.f32 %v89, %v469
  %471 = vmatmul.f32.gmra.mxu0 %v264
  %v472 = vpop.f32.mrf.mxu0
  %v473 = vadd.f32 %v89, %v472
  %474 = vmatmul.f32.gmra.mxu0 %v267
  %v475 = vpop.f32.mrf.mxu0
  %v476 = vadd.f32 %v89, %v475
  %477 = vmatmul.f32.gmra.mxu0 %v270
  %v478 = vpop.f32.mrf.mxu0
  %v479 = vadd.f32 %v89, %v478
  %480 = vmatmul.f32.gmra.mxu0 %v273
  %v481 = vpop.f32.mrf.mxu0
  %v482 = vadd.f32 %v89, %v481
  %483 = vmatmul.f32.gmra.mxu0 %v276
  %v484 = vpop.f32.mrf.mxu0
  %v485 = vadd.f32 %v89, %v484
  %486 = vmatmul.f32.gmra.mxu0 %v279
  %v487 = vpop.f32.mrf.mxu0
  %v488 = vadd.f32 %v89, %v487
  %489 = vmatmul.f32.gmra.mxu0 %v282
  %v490 = vpop.f32.mrf.mxu0
  %v491 = vadd.f32 %v89, %v490
  %492 = vdwg.mxu0
  %v493 = vmax.f32 %v302, 0.0
  %v494 = vmax.f32 %v305, 0.0
  %v495 = vmax.f32 %v308, 0.0
  %v496 = vmax.f32 %v311, 0.0
  %v497 = vmax.f32 %v314, 0.0
  %v498 = vmax.f32 %v317, 0.0
  %v499 = vmax.f32 %v320, 0.0
  %v500 = vmax.f32 %v323, 0.0
  %v501 = vmax.f32 %v326, 0.0
  %v502 = vmax.f32 %v329, 0.0
  %v503 = vmax.f32 %v332, 0.0
  %v504 = vmax.f32 %v335, 0.0
  %v505 = vmax.f32 %v338, 0.0
  %v506 = vmax.f32 %v341, 0.0
  %v507 = vmax.f32 %v344, 0.0
  %v508 = vmax.f32 %v347, 0.0
  %v509 = vmax.f32 %v350, 0.0
  %v510 = vmax.f32 %v353, 0.0
  %v511 = vmax.f32 %v356, 0.0
  %v512 = vmax.f32 %v359, 0.0
  %v513 = vmax.f32 %v362, 0.0
  %v514 = vmax.f32 %v365, 0.0
  %v515 = vmax.f32 %v368, 0.0
  %v516 = vmax.f32 %v371, 0.0
  %v517 = vmax.f32 %v374, 0.0
  %v518 = vmax.f32 %v377, 0.0
  %v519 = vmax.f32 %v380, 0.0
  %v520 = vmax.f32 %v383, 0.0
  %v521 = vmax.f32 %v386, 0.0
  %v522 = vmax.f32 %v389, 0.0
  %v523 = vmax.f32 %v392, 0.0
  %v524 = vmax.f32 %v395, 0.0
  %v525 = vmax.f32 %v398, 0.0
  %v526 = vmax.f32 %v401, 0.0
  %v527 = vmax.f32 %v404, 0.0
  %v528 = vmax.f32 %v407, 0.0
  %v529 = vmax.f32 %v410, 0.0
  %v530 = vmax.f32 %v413, 0.0
  %v531 = vmax.f32 %v416, 0.0
  %v532 = vmax.f32 %v419, 0.0
  %v533 = vmax.f32 %v422, 0.0
  %v534 = vmax.f32 %v425, 0.0
  %v535 = vmax.f32 %v428, 0.0
  %v536 = vmax.f32 %v431, 0.0
  %v537 = vmax.f32 %v434, 0.0
  %v538 = vmax.f32 %v437, 0.0
  %v539 = vmax.f32 %v440, 0.0
  %v540 = vmax.f32 %v443, 0.0
  %v541 = vmax.f32 %v446, 0.0
  %v542 = vmax.f32 %v449, 0.0
  %v543 = vmax.f32 %v452, 0.0
  %v544 = vmax.f32 %v455, 0.0
  %v545 = vmax.f32 %v458, 0.0
  %v546 = vmax.f32 %v461, 0.0
  %v547 = vmax.f32 %v464, 0.0
  %v548 = vmax.f32 %v467, 0.0
  %v549 = vmax.f32 %v470, 0.0
  %v550 = vmax.f32 %v473, 0.0
  %v551 = vmax.f32 %v476, 0.0
  %v552 = vmax.f32 %v479, 0.0
  %v553 = vmax.f32 %v482, 0.0
  %v554 = vmax.f32 %v485, 0.0
  %v555 = vmax.f32 %v488, 0.0
  %v556 = vmax.f32 %v491, 0.0
  %vm557 = vcmask 31744
  %558 = vst.msk [vmem:[%s5] sm:$0xff] %vm557, %v493
  %559 = vst.msk [vmem:[%s5 + $0x8] sm:$0xff] %vm557, %v494
  %560 = vst.msk [vmem:[%s5 + $0x10] sm:$0xff] %vm557, %v495
  %561 = vst.msk [vmem:[%s5 + $0x18] sm:$0xff] %vm557, %v496
  %562 = vst.msk [vmem:[%s5 + $0x20] sm:$0xff] %vm557, %v497
  %563 = vst.msk [vmem:[%s5 + $0x28] sm:$0xff] %vm557, %v498
  %564 = vst.msk [vmem:[%s5 + $0x30] sm:$0xff] %vm557, %v499
  %565 = vst.msk [vmem:[%s5 + $0x38] sm:$0xff] %vm557, %v500
  %566 = vst.msk [vmem:[%s5 + $0x40] sm:$0xff] %vm557, %v501
  %567 = vst.msk [vmem:[%s5 + $0x48] sm:$0xff] %vm557, %v502
  %568 = vst.msk [vmem:[%s5 + $0x50] sm:$0xff] %vm557, %v503
  %569 = vst.msk [vmem:[%s5 + $0x58] sm:$0xff] %vm557, %v504
  %570 = vst.msk [vmem:[%s5 + $0x60] sm:$0xff] %vm557, %v505
  %571 = vst.msk [vmem:[%s5 + $0x68] sm:$0xff] %vm557, %v506
  %572 = vst.msk [vmem:[%s5 + $0x70] sm:$0xff] %vm557, %v507
  %573 = vst.msk [vmem:[%s5 + $0x78] sm:$0xff] %vm557, %v508
  %574 = vst.msk [vmem:[%s5 + $0x80] sm:$0xff] %vm557, %v509
  %575 = vst.msk [vmem:[%s5 + $0x88] sm:$0xff] %vm557, %v510
  %576 = vst.msk [vmem:[%s5 + $0x90] sm:$0xff] %vm557, %v511
  %577 = vst.msk [vmem:[%s5 + $0x98] sm:$0xff] %vm557, %v512
  %578 = vst.msk [vmem:[%s5 + $0xa0] sm:$0xff] %vm557, %v513
  %579 = vst.msk [vmem:[%s5 + $0xa8] sm:$0xff] %vm557, %v514
  %580 = vst.msk [vmem:[%s5 + $0xb0] sm:$0xff] %vm557, %v515
  %581 = vst.msk [vmem:[%s5 + $0xb8] sm:$0xff] %vm557, %v516
  %582 = vst.msk [vmem:[%s5 + $0xc0] sm:$0xff] %vm557, %v517
  %583 = vst.msk [vmem:[%s5 + $0xc8] sm:$0xff] %vm557, %v518
  %584 = vst.msk [vmem:[%s5 + $0xd0] sm:$0xff] %vm557, %v519
  %585 = vst.msk [vmem:[%s5 + $0xd8] sm:$0xff] %vm557, %v520
  %586 = vst.msk [vmem:[%s5 + $0xe0] sm:$0xff] %vm557, %v521
  %587 = vst.msk [vmem:[%s5 + $0xe8] sm:$0xff] %vm557, %v522
  %588 = vst.msk [vmem:[%s5 + $0xf0] sm:$0xff] %vm557, %v523
  %589 = vst.msk [vmem:[%s5 + $0xf8] sm:$0xff] %vm557, %v524
  %590 = vst.msk [vmem:[%s5 + $0x100] sm:$0xff] %vm557, %v525
  %591 = vst.msk [vmem:[%s5 + $0x108] sm:$0xff] %vm557, %v526
  %592 = vst.msk [vmem:[%s5 + $0x110] sm:$0xff] %vm557, %v527
  %593 = vst.msk [vmem:[%s5 + $0x118] sm:$0xff] %vm557, %v528
  %594 = vst.msk [vmem:[%s5 + $0x120] sm:$0xff] %vm557, %v529
  %595 = vst.msk [vmem:[%s5 + $0x128] sm:$0xff] %vm557, %v530
  %596 = vst.msk [vmem:[%s5 + $0x130] sm:$0xff] %vm557, %v531
  %597 = vst.msk [vmem:[%s5 + $0x138] sm:$0xff] %vm557, %v532
  %598 = vst.msk [vmem:[%s5 + $0x140] sm:$0xff] %vm557, %v533
  %599 = vst.msk [vmem:[%s5 + $0x148] sm:$0xff] %vm557, %v534
  %600 = vst.msk [vmem:[%s5 + $0x150] sm:$0xff] %vm557, %v535
  %601 = vst.msk [vmem:[%s5 + $0x158] sm:$0xff] %vm557, %v536
  %602 = vst.msk [vmem:[%s5 + $0x160] sm:$0xff] %vm557, %v537
  %603 = vst.msk [vmem:[%s5 + $0x168] sm:$0xff] %vm557, %v538
  %604 = vst.msk [vmem:[%s5 + $0x170] sm:$0xff] %vm557, %v539
  %605 = vst.msk [vmem:[%s5 + $0x178] sm:$0xff] %vm557, %v540
  %606 = vst.msk [vmem:[%s5 + $0x180] sm:$0xff] %vm557, %v541
  %607 = vst.msk [vmem:[%s5 + $0x188] sm:$0xff] %vm557, %v542
  %608 = vst.msk [vmem:[%s5 + $0x190] sm:$0xff] %vm557, %v543
  %609 = vst.msk [vmem:[%s5 + $0x198] sm:$0xff] %vm557, %v544
  %610 = vst.msk [vmem:[%s5 + $0x1a0] sm:$0xff] %vm557, %v545
  %611 = vst.msk [vmem:[%s5 + $0x1a8] sm:$0xff] %vm557, %v546
  %612 = vst.msk [vmem:[%s5 + $0x1b0] sm:$0xff] %vm557, %v547
  %613 = vst.msk [vmem:[%s5 + $0x1b8] sm:$0xff] %vm557, %v548
  %614 = vst.msk [vmem:[%s5 + $0x1c0] sm:$0xff] %vm557, %v549
  %615 = vst.msk [vmem:[%s5 + $0x1c8] sm:$0xff] %vm557, %v550
  %616 = vst.msk [vmem:[%s5 + $0x1d0] sm:$0xff] %vm557, %v551
  %617 = vst.msk [vmem:[%s5 + $0x1d8] sm:$0xff] %vm557, %v552
  %618 = vst.msk [vmem:[%s5 + $0x1e0] sm:$0xff] %vm557, %v553
  %619 = vst.msk [vmem:[%s5 + $0x1e8] sm:$0xff] %vm557, %v554
  %620 = vst.msk [vmem:[%s5 + $0x1f0] sm:$0xff] %vm557, %v555
  %621 = vst.msk [vmem:[%s5 + $0x1f8] sm:$0xff] %vm557, %v556
  %v622 = vld [vmem:[%s3] sm:$0xff]
  %v623 = vld [vmem:[%s4] sm:$0x1]
  %v625 = vperm.slane %v623, 0
  %627 = vmatpush.msra.mxu0 0.0
  %628 = vmatpush.msra.mxu0 0.0
  %629 = vmatpush.msra.mxu0 0.0
  %630 = vmatpush.msra.mxu0 0.0
  %631 = vmatpush.msra.mxu0 0.0
  %632 = vmatpush.msra.mxu0 0.0
  %633 = vmatpush.msra.mxu0 0.0
  %634 = vmatpush.msra.mxu0 0.0
  %635 = vmatpush.msra.mxu0 0.0
  %636 = vmatpush.msra.mxu0 0.0
  %637 = vmatpush.msra.mxu0 0.0
  %638 = vmatpush.msra.mxu0 0.0
  %639 = vmatpush.msra.mxu0 0.0
  %640 = vmatpush.msra.mxu0 0.0
  %641 = vmatpush.msra.mxu0 0.0
  %642 = vmatpush.msra.mxu0 %v622
  %643 = vmatmul.f32.gmra.mxu0 %v93
  %v644 = vpop.f32.mrf.mxu0
  %v645 = vadd.f32 %v625, %v644
  %646 = vmatmul.f32.gmra.mxu0 %v96
  %v647 = vpop.f32.mrf.mxu0
  %v648 = vadd.f32 %v625, %v647
  %649 = vmatmul.f32.gmra.mxu0 %v99
  %v650 = vpop.f32.mrf.mxu0
  %v651 = vadd.f32 %v625, %v650
  %652 = vmatmul.f32.gmra.mxu0 %v102
  %v653 = vpop.f32.mrf.mxu0
  %v654 = vadd.f32 %v625, %v653
  %655 = vmatmul.f32.gmra.mxu0 %v105
  %v656 = vpop.f32.mrf.mxu0
  %v657 = vadd.f32 %v625, %v656
  %658 = vmatmul.f32.gmra.mxu0 %v108
  %v659 = vpop.f32.mrf.mxu0
  %v660 = vadd.f32 %v625, %v659
  %661 = vmatmul.f32.gmra.mxu0 %v111
  %v662 = vpop.f32.mrf.mxu0
  %v663 = vadd.f32 %v625, %v662
  %664 = vmatmul.f32.gmra.mxu0 %v114
  %v665 = vpop.f32.mrf.mxu0
  %v666 = vadd.f32 %v625, %v665
  %667 = vmatmul.f32.gmra.mxu0 %v117
  %v668 = vpop.f32.mrf.mxu0
  %v669 = vadd.f32 %v625, %v668
  %670 = vmatmul.f32.gmra.mxu0 %v120
  %v671 = vpop.f32.mrf.mxu0
  %v672 = vadd.f32 %v625, %v671
  %673 = vmatmul.f32.gmra.mxu0 %v123
  %v674 = vpop.f32.mrf.mxu0
  %v675 = vadd.f32 %v625, %v674
  %676 = vmatmul.f32.gmra.mxu0 %v126
  %v677 = vpop.f32.mrf.mxu0
  %v678 = vadd.f32 %v625, %v677
  %679 = vmatmul.f32.gmra.mxu0 %v129
  %v680 = vpop.f32.mrf.mxu0
  %v681 = vadd.f32 %v625, %v680
  %682 = vmatmul.f32.gmra.mxu0 %v132
  %v683 = vpop.f32.mrf.mxu0
  %v684 = vadd.f32 %v625, %v683
  %685 = vmatmul.f32.gmra.mxu0 %v135
  %v686 = vpop.f32.mrf.mxu0
  %v687 = vadd.f32 %v625, %v686
  %688 = vmatmul.f32.gmra.mxu0 %v138
  %v689 = vpop.f32.mrf.mxu0
  %v690 = vadd.f32 %v625, %v689
  %691 = vmatmul.f32.gmra.mxu0 %v141
  %v692 = vpop.f32.mrf.mxu0
  %v693 = vadd.f32 %v625, %v692
  %694 = vmatmul.f32.gmra.mxu0 %v144
  %v695 = vpop.f32.mrf.mxu0
  %v696 = vadd.f32 %v625, %v695
  %697 = vmatmul.f32.gmra.mxu0 %v147
  %v698 = vpop.f32.mrf.mxu0
  %v699 = vadd.f32 %v625, %v698
  %700 = vmatmul.f32.gmra.mxu0 %v150
  %v701 = vpop.f32.mrf.mxu0
  %v702 = vadd.f32 %v625, %v701
  %703 = vmatmul.f32.gmra.mxu0 %v153
  %v704 = vpop.f32.mrf.mxu0
  %v705 = vadd.f32 %v625, %v704
  %706 = vmatmul.f32.gmra.mxu0 %v156
  %v707 = vpop.f32.mrf.mxu0
  %v708 = vadd.f32 %v625, %v707
  %709 = vmatmul.f32.gmra.mxu0 %v159
  %v710 = vpop.f32.mrf.mxu0
  %v711 = vadd.f32 %v625, %v710
  %712 = vmatmul.f32.gmra.mxu0 %v162
  %v713 = vpop.f32.mrf.mxu0
  %v714 = vadd.f32 %v625, %v713
  %715 = vmatmul.f32.gmra.mxu0 %v165
  %v716 = vpop.f32.mrf.mxu0
  %v717 = vadd.f32 %v625, %v716
  %718 = vmatmul.f32.gmra.mxu0 %v168
  %v719 = vpop.f32.mrf.mxu0
  %v720 = vadd.f32 %v625, %v719
  %721 = vmatmul.f32.gmra.mxu0 %v171
  %v722 = vpop.f32.mrf.mxu0
  %v723 = vadd.f32 %v625, %v722
  %724 = vmatmul.f32.gmra.mxu0 %v174
  %v725 = vpop.f32.mrf.mxu0
  %v726 = vadd.f32 %v625, %v725
  %727 = vmatmul.f32.gmra.mxu0 %v177
  %v728 = vpop.f32.mrf.mxu0
  %v729 = vadd.f32 %v625, %v728
  %730 = vmatmul.f32.gmra.mxu0 %v180
  %v731 = vpop.f32.mrf.mxu0
  %v732 = vadd.f32 %v625, %v731
  %733 = vmatmul.f32.gmra.mxu0 %v183
  %v734 = vpop.f32.mrf.mxu0
  %v735 = vadd.f32 %v625, %v734
  %736 = vmatmul.f32.gmra.mxu0 %v186
  %v737 = vpop.f32.mrf.mxu0
  %v738 = vadd.f32 %v625, %v737
  %739 = vmatmul.f32.gmra.mxu0 %v189
  %v740 = vpop.f32.mrf.mxu0
  %v741 = vadd.f32 %v625, %v740
  %742 = vmatmul.f32.gmra.mxu0 %v192
  %v743 = vpop.f32.mrf.mxu0
  %v744 = vadd.f32 %v625, %v743
  %745 = vmatmul.f32.gmra.mxu0 %v195
  %v746 = vpop.f32.mrf.mxu0
  %v747 = vadd.f32 %v625, %v746
  %748 = vmatmul.f32.gmra.mxu0 %v198
  %v749 = vpop.f32.mrf.mxu0
  %v750 = vadd.f32 %v625, %v749
  %751 = vmatmul.f32.gmra.mxu0 %v201
  %v752 = vpop.f32.mrf.mxu0
  %v753 = vadd.f32 %v625, %v752
  %754 = vmatmul.f32.gmra.mxu0 %v204
  %v755 = vpop.f32.mrf.mxu0
  %v756 = vadd.f32 %v625, %v755
  %757 = vmatmul.f32.gmra.mxu0 %v207
  %v758 = vpop.f32.mrf.mxu0
  %v759 = vadd.f32 %v625, %v758
  %760 = vmatmul.f32.gmra.mxu0 %v210
  %v761 = vpop.f32.mrf.mxu0
  %v762 = vadd.f32 %v625, %v761
  %763 = vmatmul.f32.gmra.mxu0 %v213
  %v764 = vpop.f32.mrf.mxu0
  %v765 = vadd.f32 %v625, %v764
  %766 = vmatmul.f32.gmra.mxu0 %v216
  %v767 = vpop.f32.mrf.mxu0
  %v768 = vadd.f32 %v625, %v767
  %769 = vmatmul.f32.gmra.mxu0 %v219
  %v770 = vpop.f32.mrf.mxu0
  %v771 = vadd.f32 %v625, %v770
  %772 = vmatmul.f32.gmra.mxu0 %v222
  %v773 = vpop.f32.mrf.mxu0
  %v774 = vadd.f32 %v625, %v773
  %775 = vmatmul.f32.gmra.mxu0 %v225
  %v776 = vpop.f32.mrf.mxu0
  %v777 = vadd.f32 %v625, %v776
  %778 = vmatmul.f32.gmra.mxu0 %v228
  %v779 = vpop.f32.mrf.mxu0
  %v780 = vadd.f32 %v625, %v779
  %781 = vmatmul.f32.gmra.mxu0 %v231
  %v782 = vpop.f32.mrf.mxu0
  %v783 = vadd.f32 %v625, %v782
  %784 = vmatmul.f32.gmra.mxu0 %v234
  %v785 = vpop.f32.mrf.mxu0
  %v786 = vadd.f32 %v625, %v785
  %787 = vmatmul.f32.gmra.mxu0 %v237
  %v788 = vpop.f32.mrf.mxu0
  %v789 = vadd.f32 %v625, %v788
  %790 = vmatmul.f32.gmra.mxu0 %v240
  %v791 = vpop.f32.mrf.mxu0
  %v792 = vadd.f32 %v625, %v791
  %793 = vmatmul.f32.gmra.mxu0 %v243
  %v794 = vpop.f32.mrf.mxu0
  %v795 = vadd.f32 %v625, %v794
  %796 = vmatmul.f32.gmra.mxu0 %v246
  %v797 = vpop.f32.mrf.mxu0
  %v798 = vadd.f32 %v625, %v797
  %799 = vmatmul.f32.gmra.mxu0 %v249
  %v800 = vpop.f32.mrf.mxu0
  %v801 = vadd.f32 %v625, %v800
  %802 = vmatmul.f32.gmra.mxu0 %v252
  %v803 = vpop.f32.mrf.mxu0
  %v804 = vadd.f32 %v625, %v803
  %805 = vmatmul.f32.gmra.mxu0 %v255
  %v806 = vpop.f32.mrf.mxu0
  %v807 = vadd.f32 %v625, %v806
  %808 = vmatmul.f32.gmra.mxu0 %v258
  %v809 = vpop.f32.mrf.mxu0
  %v810 = vadd.f32 %v625, %v809
  %811 = vmatmul.f32.gmra.mxu0 %v261
  %v812 = vpop.f32.mrf.mxu0
  %v813 = vadd.f32 %v625, %v812
  %814 = vmatmul.f32.gmra.mxu0 %v264
  %v815 = vpop.f32.mrf.mxu0
  %v816 = vadd.f32 %v625, %v815
  %817 = vmatmul.f32.gmra.mxu0 %v267
  %v818 = vpop.f32.mrf.mxu0
  %v819 = vadd.f32 %v625, %v818
  %820 = vmatmul.f32.gmra.mxu0 %v270
  %v821 = vpop.f32.mrf.mxu0
  %v822 = vadd.f32 %v625, %v821
  %823 = vmatmul.f32.gmra.mxu0 %v273
  %v824 = vpop.f32.mrf.mxu0
  %v825 = vadd.f32 %v625, %v824
  %826 = vmatmul.f32.gmra.mxu0 %v276
  %v827 = vpop.f32.mrf.mxu0
  %v828 = vadd.f32 %v625, %v827
  %829 = vmatmul.f32.gmra.mxu0 %v279
  %v830 = vpop.f32.mrf.mxu0
  %v831 = vadd.f32 %v625, %v830
  %832 = vmatmul.f32.gmra.mxu0 %v282
  %v833 = vpop.f32.mrf.mxu0
  %v834 = vadd.f32 %v625, %v833
  %835 = vdwg.mxu0
  %vm836 = vcmask 130048
  %837 = vst.msk [vmem:[%s6] sm:$0xff] %vm836, %v645
  %838 = vst.msk [vmem:[%s6 + $0x8] sm:$0xff] %vm836, %v648
  %839 = vst.msk [vmem:[%s6 + $0x10] sm:$0xff] %vm836, %v651
  %840 = vst.msk [vmem:[%s6 + $0x18] sm:$0xff] %vm836, %v654
  %841 = vst.msk [vmem:[%s6 + $0x20] sm:$0xff] %vm836, %v657
  %842 = vst.msk [vmem:[%s6 + $0x28] sm:$0xff] %vm836, %v660
  %843 = vst.msk [vmem:[%s6 + $0x30] sm:$0xff] %vm836, %v663
  %844 = vst.msk [vmem:[%s6 + $0x38] sm:$0xff] %vm836, %v666
  %845 = vst.msk [vmem:[%s6 + $0x40] sm:$0xff] %vm836, %v669
  %846 = vst.msk [vmem:[%s6 + $0x48] sm:$0xff] %vm836, %v672
  %847 = vst.msk [vmem:[%s6 + $0x50] sm:$0xff] %vm836, %v675
  %848 = vst.msk [vmem:[%s6 + $0x58] sm:$0xff] %vm836, %v678
  %849 = vst.msk [vmem:[%s6 + $0x60] sm:$0xff] %vm836, %v681
  %850 = vst.msk [vmem:[%s6 + $0x68] sm:$0xff] %vm836, %v684
  %851 = vst.msk [vmem:[%s6 + $0x70] sm:$0xff] %vm836, %v687
  %852 = vst.msk [vmem:[%s6 + $0x78] sm:$0xff] %vm836, %v690
  %853 = vst.msk [vmem:[%s6 + $0x80] sm:$0xff] %vm836, %v693
  %854 = vst.msk [vmem:[%s6 + $0x88] sm:$0xff] %vm836, %v696
  %855 = vst.msk [vmem:[%s6 + $0x90] sm:$0xff] %vm836, %v699
  %856 = vst.msk [vmem:[%s6 + $0x98] sm:$0xff] %vm836, %v702
  %857 = vst.msk [vmem:[%s6 + $0xa0] sm:$0xff] %vm836, %v705
  %858 = vst.msk [vmem:[%s6 + $0xa8] sm:$0xff] %vm836, %v708
  %859 = vst.msk [vmem:[%s6 + $0xb0] sm:$0xff] %vm836, %v711
  %860 = vst.msk [vmem:[%s6 + $0xb8] sm:$0xff] %vm836, %v714
  %861 = vst.msk [vmem:[%s6 + $0xc0] sm:$0xff] %vm836, %v717
  %862 = vst.msk [vmem:[%s6 + $0xc8] sm:$0xff] %vm836, %v720
  %863 = vst.msk [vmem:[%s6 + $0xd0] sm:$0xff] %vm836, %v723
  %864 = vst.msk [vmem:[%s6 + $0xd8] sm:$0xff] %vm836, %v726
  %865 = vst.msk [vmem:[%s6 + $0xe0] sm:$0xff] %vm836, %v729
  %866 = vst.msk [vmem:[%s6 + $0xe8] sm:$0xff] %vm836, %v732
  %867 = vst.msk [vmem:[%s6 + $0xf0] sm:$0xff] %vm836, %v735
  %868 = vst.msk [vmem:[%s6 + $0xf8] sm:$0xff] %vm836, %v738
  %869 = vst.msk [vmem:[%s6 + $0x100] sm:$0xff] %vm836, %v741
  %870 = vst.msk [vmem:[%s6 + $0x108] sm:$0xff] %vm836, %v744
  %871 = vst.msk [vmem:[%s6 + $0x110] sm:$0xff] %vm836, %v747
  %872 = vst.msk [vmem:[%s6 + $0x118] sm:$0xff] %vm836, %v750
  %873 = vst.msk [vmem:[%s6 + $0x120] sm:$0xff] %vm836, %v753
  %874 = vst.msk [vmem:[%s6 + $0x128] sm:$0xff] %vm836, %v756
  %875 = vst.msk [vmem:[%s6 + $0x130] sm:$0xff] %vm836, %v759
  %876 = vst.msk [vmem:[%s6 + $0x138] sm:$0xff] %vm836, %v762
  %877 = vst.msk [vmem:[%s6 + $0x140] sm:$0xff] %vm836, %v765
  %878 = vst.msk [vmem:[%s6 + $0x148] sm:$0xff] %vm836, %v768
  %879 = vst.msk [vmem:[%s6 + $0x150] sm:$0xff] %vm836, %v771
  %880 = vst.msk [vmem:[%s6 + $0x158] sm:$0xff] %vm836, %v774
  %881 = vst.msk [vmem:[%s6 + $0x160] sm:$0xff] %vm836, %v777
  %882 = vst.msk [vmem:[%s6 + $0x168] sm:$0xff] %vm836, %v780
  %883 = vst.msk [vmem:[%s6 + $0x170] sm:$0xff] %vm836, %v783
  %884 = vst.msk [vmem:[%s6 + $0x178] sm:$0xff] %vm836, %v786
  %885 = vst.msk [vmem:[%s6 + $0x180] sm:$0xff] %vm836, %v789
  %886 = vst.msk [vmem:[%s6 + $0x188] sm:$0xff] %vm836, %v792
  %887 = vst.msk [vmem:[%s6 + $0x190] sm:$0xff] %vm836, %v795
  %888 = vst.msk [vmem:[%s6 + $0x198] sm:$0xff] %vm836, %v798
  %889 = vst.msk [vmem:[%s6 + $0x1a0] sm:$0xff] %vm836, %v801
  %890 = vst.msk [vmem:[%s6 + $0x1a8] sm:$0xff] %vm836, %v804
  %891 = vst.msk [vmem:[%s6 + $0x1b0] sm:$0xff] %vm836, %v807
  %892 = vst.msk [vmem:[%s6 + $0x1b8] sm:$0xff] %vm836, %v810
  %893 = vst.msk [vmem:[%s6 + $0x1c0] sm:$0xff] %vm836, %v813
  %894 = vst.msk [vmem:[%s6 + $0x1c8] sm:$0xff] %vm836, %v816
  %895 = vst.msk [vmem:[%s6 + $0x1d0] sm:$0xff] %vm836, %v819
  %896 = vst.msk [vmem:[%s6 + $0x1d8] sm:$0xff] %vm836, %v822
  %897 = vst.msk [vmem:[%s6 + $0x1e0] sm:$0xff] %vm836, %v825
  %898 = vst.msk [vmem:[%s6 + $0x1e8] sm:$0xff] %vm836, %v828
  %899 = vst.msk [vmem:[%s6 + $0x1f0] sm:$0xff] %vm836, %v831
  %900 = vst.msk [vmem:[%s6 + $0x1f8] sm:$0xff] %vm836, %v834
  // Predicated region
  $region22: #{tpu_custom_call.1} parent=0 // pred_check
    _
  $region23: #{tpu_custom_call.1} parent=0 // pred_check_branch
    %902 = sbr.rel (0) target = $region25
  $region24: #{tpu_custom_call.1} parent=0 // pred_region
    _
  $region25: #{tpu_custom_call.1} parent=0 // pred_fallthru
    _
  // Predicated region
  $region26: #{tpu_custom_call.1} parent=0 // pred_check
    _
  $region27: #{tpu_custom_call.1} parent=0 // pred_check_branch
    %904 = sbr.rel (0) target = $region29
  $region28: #{tpu_custom_call.1} parent=0 // pred_region
    _
  $region29: #{tpu_custom_call.1} parent=0 // pred_fallthru
    _
  // Predicated region
  $region30: #{tpu_custom_call.1} parent=0 // pred_check
    _
  $region31: #{tpu_custom_call.1} parent=0 // pred_check_branch
    %906 = sbr.rel (0) target = $region33
  $region32: #{tpu_custom_call.1} parent=0 // pred_region
    _
  $region33: #{tpu_custom_call.1} parent=0 // pred_fallthru
    _
  // Predicated region
  $region34: #{tpu_custom_call.1} parent=0 // pred_check
    _
  $region35: #{tpu_custom_call.1} parent=0 // pred_check_branch
    %908 = sbr.rel (0) target = $region37
  $region36: #{tpu_custom_call.1} parent=0 // pred_region
    _
  $region37: #{tpu_custom_call.1} parent=0 // pred_fallthru
    _

</llo_original>
